<compile_context>
chip_gen: v6e
topology: v6e:2x2x1
jax: 0.10.0
libtpu: 0.0.40
codegen_flags: <defaults>
</compile_context>

<pallas_src>
import functools

import jax
import jax.numpy as jnp
from jax.experimental import pallas as pl
from jax.experimental.pallas import tpu as pltpu


def _neuronal_kernel(xt_ref, ht_ref, at_ref, o_ref):
    """One (j, k) grid step of  f^T = -x^T + h^T @ A^T.

    xt_ref : (M, tn)  j-slice of x^T (f32), residual term.
    ht_ref : (M, tk)  k-slice of h^T = sigmoid(d*x - u)^T, in A's dtype.
    at_ref : (tk, tn) contiguous pre-blocked tile of A^T (leading dims squeezed).
    o_ref  : (M, tn)  f32 output tile, accumulated in place across k.
    """
    k = pl.program_id(1)
    prod = jnp.dot(ht_ref[...], at_ref[...], preferred_element_type=jnp.float32)

    @pl.when(k == 0)
    def _():
        o_ref[...] = prod - xt_ref[...]

    @pl.when(k > 0)
    def _():
        o_ref[...] += prod


def _make_a_spec(tk, tn, extra_buffering):
    block_shape = (None, None, tk, tn)          # leading tile-index dims squeezed
    index_map = lambda j, k: (j, k, 0, 0)
    if extra_buffering:
        try:
            return pl.BlockSpec(block_shape, index_map,
                                pipeline_mode=pl.Buffered(3))
        except TypeError:  # jax version without pipeline_mode on BlockSpec
            pass
    return pl.BlockSpec(block_shape, index_map)


def _neuronal_forward(x, at_blocked, *, u, d, tn, tk, a_dtype, vmem_limit,
                      extra_buffering):
    """f = -x + A @ sigmoid(d*x - u), computed lane-dense as f^T = -x^T + h^T @ A^T."""
    N, M = x.shape
    xt = x.T                                              # (M, N), lane-dense
    ht = jax.nn.sigmoid(d * xt - u).astype(a_dtype)       # hoisted nonlinearity

    ft = pl.pallas_call(
        _neuronal_kernel,
        out_shape=jax.ShapeDtypeStruct((M, N), jnp.float32),
        grid_spec=pltpu.PrefetchScalarGridSpec(
            num_scalar_prefetch=0,
            grid=(N // tn, N // tk),
            in_specs=[
                pl.BlockSpec((M, tn), lambda j, k: (0, j)),   # x^T residual slice
                pl.BlockSpec((M, tk), lambda j, k: (0, k)),   # h^T contraction slice
                _make_a_spec(tk, tn, extra_buffering),        # contiguous A^T tile
            ],
            out_specs=pl.BlockSpec((M, tn), lambda j, k: (0, j)),
        ),
        compiler_params=pltpu.CompilerParams(
            dimension_semantics=("parallel", "arbitrary"),
            vmem_limit_bytes=vmem_limit,
        ),
    )(xt, ht, at_blocked)
    return ft.T


def _pick_tile(n, cap):
    """Largest multiple of 128 that divides n and is <= cap (min 128)."""
    cap = int(min(cap, n))
    t = max(128, cap - cap % 128)
    while t > 128 and n % t != 0:
        t -= 128
    return t


def _chip_config():
    """Per-generation VMEM budgets / TensorCore count (conservative fallback)."""
    kind = ""
    try:
        kind = jax.devices()[0].device_kind.lower()
    except Exception:
        pass
    if "v7" in kind:
        # 64 MiB physical VMEM, 2 TensorCores, very fast HBM.
        return dict(per_buffer=12 * 2**20, vmem_limit=48 * 2**20,
                    num_cores=2, fast_hbm=True)
    # v5e / v6e (and fallback): 128 MiB physical VMEM (scoped default is only
    # 16/32 MiB), single TensorCore, slower HBM.
    return dict(per_buffer=20 * 2**20, vmem_limit=80 * 2**20,
                num_cores=1, fast_hbm=False)


class NeuronalDynamics:
    """Pallas TPU port of the PyTorch module: forward(t, x) = -x + A @ h(x)."""

    def __init__(self, A, u=3.5, d=2.0, beta_c=None, a_dtype=jnp.bfloat16):
        A = jnp.asarray(A, jnp.float32)
        N, K = A.shape
        assert N == K, "A must be square (N, N)"
        # TODO(synk): add a pad/cdiv+mask path for N not a multiple of 128.
        assert N % 128 == 0, "N must be a multiple of 128"
        self.N = N
        self.u = float(u)
        self.d = float(d)
        self.a_dtype = jnp.dtype(a_dtype)

        cfg = _chip_config()
        itemsize = self.a_dtype.itemsize
        per_buffer = cfg["per_buffer"]

        # Collapse the K grid axis (tk = N, one MXU pass per output block)
        # whenever a full-K (N, tn) A^T slab fits the per-buffer budget.
        tn_cap = per_buffer // (N * itemsize)
        if tn_cap >= 128:
            tn = _pick_tile(N, tn_cap)
            tk = N
        else:
            tn = _pick_tile(N, 512)
            tk = _pick_tile(N, max(per_buffer // (tn * itemsize), 128))

        # On 2-TensorCore chips keep the "parallel" j axis shardable
        # (>= 2 blocks, preferably an even count); single-core chips keep tn
        # as large as the VMEM budget allows.
        if cfg["num_cores"] >= 2:
            while N // tn < 2 and tn > 128:
                tn = _pick_tile(N, tn // 2)
            if (N // tn) % 2 == 1 and tn > 128:
                tn_even = _pick_tile(N, tn - 128)
                if (N // tn_even) % 2 == 0:
                    tn = tn_even
        self.tn, self.tk = tn, tk

        # Extra input buffering only pays off on fast-HBM chips with small tiles.
        extra_buffering = cfg["fast_hbm"] and (tk * tn * itemsize <= 4 * 2**20)

        # A is a static adjacency: transpose, narrow, and pre-block it ONCE so
        # each (tk, tn) tile of A^T is a single contiguous DMA burst.
        nj, nk = N // tn, N // tk
        at = A.T.astype(self.a_dtype)                         # rows = K, cols = output j
        self.At_blocked = jnp.asarray(
            at.reshape(nk, tk, nj, tn).transpose(2, 0, 1, 3))  # (nj, nk, tk, tn)

        self._fwd = jax.jit(functools.partial(
            _neuronal_forward, u=self.u, d=self.d, tn=tn, tk=tk,
            a_dtype=self.a_dtype, vmem_limit=cfg["vmem_limit"],
            extra_buffering=extra_buffering))

    def forward(self, t, x):
        # TODO(synk): the torch.sparse.mm branch is handled via the same dense path.
        x = jnp.asarray(x, jnp.float32)
        assert x.ndim == 2 and x.shape[0] == self.N, "x must be (N, M)"
        return self._fwd(x, self.At_blocked)

    __call__ = forward


if __name__ == "__main__":
    # Small, deterministic example: N nodes, M independent state columns.
    N, M = 256, 8
    u, d = 3.5, 2.0

    key = jax.random.PRNGKey(0)
    k_a, k_x = jax.random.split(key)
    # 0/1 adjacency (typical neuronal coupling matrix); exact under bf16.
    A = (jax.random.uniform(k_a, (N, N)) < 0.5).astype(jnp.float32)
    x = jax.random.normal(k_x, (N, M), dtype=jnp.float32)

    # Pure-JAX references of the PyTorch forward.
    h = jax.nn.sigmoid(d * x - u)                 # == 1 / (1 + exp(u - d*x))
    f_ref = -x + jnp.dot(A, h, precision=jax.lax.Precision.HIGHEST)
    f_ref_bf16 = -x + jnp.dot(
        A, h.astype(jnp.bfloat16).astype(jnp.float32),
        precision=jax.lax.Precision.HIGHEST)

    # Default fast path: bf16 A / h stream (exact A since adjacency is 0/1).
    dyn = NeuronalDynamics(A, u=u, d=d)
    f = jax.block_until_ready(dyn.forward(0.0, x))
    assert f.shape == (N, M)
    assert jnp.allclose(f, f_ref_bf16, atol=5e-3, rtol=5e-3), (
        "bf16-stream kernel mismatch vs bf16-quantized reference: "
        f"max abs err {float(jnp.max(jnp.abs(f - f_ref_bf16)))}")
    assert jnp.allclose(f, f_ref, atol=1e-1, rtol=2e-2), (
        "bf16-stream kernel mismatch vs exact reference: "
        f"max abs err {float(jnp.max(jnp.abs(f - f_ref)))}")

    # Full-precision stream: must match the spec formula tightly.
    dyn32 = NeuronalDynamics(A, u=u, d=d, a_dtype=jnp.float32)
    f32v = jax.block_until_ready(dyn32.forward(0.0, x))
    assert jnp.allclose(f32v, f_ref, atol=1e-3, rtol=1e-3), (
        "f32-stream kernel mismatch vs exact reference: "
        f"max abs err {float(jnp.max(jnp.abs(f32v - f_ref)))}")

    print("KERNEL_OK")
</pallas_src>

<mosaic_0001>
module attributes {stable_mosaic.version = 11 : i64} {
  func.func @_neuronal_kernel(%arg0: i32, %arg1: i32, %arg2: memref<8x256xf32, #tpu.memory_space<vmem>>, %arg3: memref<8x256xbf16, #tpu.memory_space<vmem>>, %arg4: memref<1x1x256x256xbf16, #tpu.memory_space<vmem>>, %arg5: memref<8x256xf32, #tpu.memory_space<vmem>>) attributes {dimension_semantics = [#tpu.dimension_semantics<parallel>, #tpu.dimension_semantics<arbitrary>], iteration_bounds = array<i64: 1, 1>, scalar_prefetch = 0 : i64, scratch_operands = 0 : i64, tpu.core_type = #tpu.core_type<tc>, window_params = [{transform_indices = @transform_0, window_bounds = array<i64: 8, 256>}, {transform_indices = @transform_1, window_bounds = array<i64: 8, 256>}, {transform_indices = @transform_2, window_bounds = array<i64: 1, 1, 256, 256>}, {transform_indices = @transform_3, window_bounds = array<i64: 8, 256>}]} {
    %c0 = arith.constant 0 : index
    %c0_0 = arith.constant 0 : index
    %0 = vector.load %arg3[%c0, %c0_0] : memref<8x256xbf16, #tpu.memory_space<vmem>>, vector<8x256xbf16>
    %c0_1 = arith.constant 0 : index
    %c0_2 = arith.constant 0 : index
    %c0_3 = arith.constant 0 : index
    %c0_4 = arith.constant 0 : index
    %1 = vector.load %arg4[%c0_1, %c0_2, %c0_3, %c0_4] : memref<1x1x256x256xbf16, #tpu.memory_space<vmem>>, vector<1x1x256x256xbf16>
    %2 = vector.shape_cast %1 : vector<1x1x256x256xbf16> to vector<256x256xbf16>
    %cst = arith.constant dense<0.000000e+00> : vector<8x256xf32>
    %3 = tpu.matmul %0, %2, %cst {dimension_numbers = #tpu.dot_dimension_numbers<[1], [0], [0], [1], [0, 0, 1, 1], [], []>} : vector<8x256xbf16>, vector<256x256xbf16>, vector<8x256xf32> -> vector<8x256xf32>
    %c0_i32 = arith.constant 0 : i32
    %4 = arith.cmpi eq, %arg1, %c0_i32 : i32
    %5 = arith.extui %4 : i1 to i32
    %c0_i32_5 = arith.constant 0 : i32
    %6 = arith.cmpi ne, %5, %c0_i32_5 : i32
    scf.if %6 {
      %c0_8 = arith.constant 0 : index
      %c0_9 = arith.constant 0 : index
      %10 = vector.load %arg2[%c0_8, %c0_9] : memref<8x256xf32, #tpu.memory_space<vmem>>, vector<8x256xf32>
      %11 = arith.subf %3, %10 : vector<8x256xf32>
      %c0_10 = arith.constant 0 : index
      %c0_11 = arith.constant 0 : index
      %12 = vector.load %arg5[%c0_10, %c0_11] : memref<8x256xf32, #tpu.memory_space<vmem>>, vector<8x256xf32>
      tpu.vector_store %arg5[%c0_10, %c0_11], %11 {strides = array<i32>} : memref<8x256xf32, #tpu.memory_space<vmem>>, vector<8x256xf32>,
    } else {
    }
    %c0_i32_6 = arith.constant 0 : i32
    %7 = arith.cmpi sgt, %arg1, %c0_i32_6 : i32
    %8 = arith.extui %7 : i1 to i32
    %c0_i32_7 = arith.constant 0 : i32
    %9 = arith.cmpi ne, %8, %c0_i32_7 : i32
    scf.if %9 {
      %c0_8 = arith.constant 0 : index
      %c0_9 = arith.constant 0 : index
      %10 = vector.load %arg5[%c0_8, %c0_9] : memref<8x256xf32, #tpu.memory_space<vmem>>, vector<8x256xf32>
      %11 = arith.addf %10, %3 : vector<8x256xf32>
      %c0_10 = arith.constant 0 : index
      %c0_11 = arith.constant 0 : index
      %12 = vector.load %arg5[%c0_10, %c0_11] : memref<8x256xf32, #tpu.memory_space<vmem>>, vector<8x256xf32>
      tpu.vector_store %arg5[%c0_10, %c0_11], %11 {strides = array<i32>} : memref<8x256xf32, #tpu.memory_space<vmem>>, vector<8x256xf32>,
    } else {
    }
    return
  }
  func.func @transform_0(%arg0: i32, %arg1: i32) -> (i32, i32) {
    %c0_i32 = arith.constant 0 : i32
    %c0_i32_0 = arith.constant 0 : i32
    return %c0_i32, %arg0 : i32, i32
  }
  func.func @transform_1(%arg0: i32, %arg1: i32) -> (i32, i32) {
    %c0_i32 = arith.constant 0 : i32
    %c0_i32_0 = arith.constant 0 : i32
    return %c0_i32, %arg1 : i32, i32
  }
  func.func @transform_2(%arg0: i32, %arg1: i32) -> (i32, i32, i32, i32) {
    %c0_i32 = arith.constant 0 : i32
    %c0_i32_0 = arith.constant 0 : i32
    %c0_i32_1 = arith.constant 0 : i32
    return %arg0, %arg1, %c0_i32, %c0_i32_0 : i32, i32, i32, i32
  }
  func.func @transform_3(%arg0: i32, %arg1: i32) -> (i32, i32) {
    %c0_i32 = arith.constant 0 : i32
    %c0_i32_0 = arith.constant 0 : i32
    return %c0_i32, %arg0 : i32, i32
  }
}

</mosaic_0001>

<llo_original>
// kernel: _neuronal_forward.1
$region0: #{_neuronal_forward.1}
  #allocation0 [shape = 'u32[]', space=smem, size = 0x4, offset = 0x4, fixed_abs, tag = 'smem constant byte address 0x4 - core index']
  #allocation1 [shape = 'u32[144,128]{1,0:T(1,128)}', space=vmem, size = 0x12000, scoped, tag = 'internal scratch']
  %s0 = inlined_call_operand.vmem [shape: f32[8,256], index: 0, kind: input, shape index: {}]
  %s1 = inlined_call_operand.vmem [shape: bf16[8,256], index: 1, kind: input, shape index: {}]
  %s2 = inlined_call_operand.hbm [shape: bf16[1,1,256,256], index: 2, kind: input, shape index: {}]
  %s3 = inlined_call_operand.hbm [shape: f32[8,256], index: 3, kind: output, shape index: {}]
  %s4 = sld [smem:[#allocation0]]
  $region34: #{_neuronal_forward.1} parent=0
    _
  %s6 = ssub.s32 1, %s4
  %s7 = scalar_select 0, %s6, %s4
  $region1: #{_neuronal_forward.1} parent=0
    #allocation2 [shape = 'u8[131072]{0}', space=vmem, size = 0x20000, scoped, tag = 'input window, operand 2, single buffered']
    #allocation3 [shape = 's32[1]{0}', space=sflag, size = 0x4, scoped, tag = 'scoped memory for _neuronal_forward.1']
    #allocation4 [shape = 's32[1]{0}', space=sflag, size = 0x4, scoped, tag = 'scoped memory for _neuronal_forward.1']
    #allocation5 [shape = 'u8[8192]{0}', space=vmem, size = 0x2000, scoped, tag = 'output window, operand 0, single buffered']
    %8 = vsyncpa [#allocation3], 0
    %9 = vsyncpa [#allocation4], 0
    // Predicated region
    $region2: #{_neuronal_forward.1} parent=1 // pred_check
      _
    $region3: #{_neuronal_forward.1} parent=1 // pred_check_branch
      %11 = sbr.rel (0) target = $region5
    $region4: #{_neuronal_forward.1} parent=1 // pred_region
      _
    $region5: #{_neuronal_forward.1} parent=1 // pred_fallthru
      _
    // Predicated region
    $region6: #{_neuronal_forward.1} parent=1 // pred_check
      _
    $region7: #{_neuronal_forward.1} parent=1 // pred_check_branch
      %13 = sbr.rel (0) target = $region9
    $region8: #{_neuronal_forward.1} parent=1 // pred_region
      _
    $region9: #{_neuronal_forward.1} parent=1 // pred_fallthru
      _
    // Predicated region
    $region10: #{_neuronal_forward.1} parent=1 // pred_check
      _
    $region11: #{_neuronal_forward.1} parent=1 // pred_check_branch
      %15 = sbr.rel (0) target = $region13
    $region12: #{_neuronal_forward.1} parent=1 // pred_region
      %s17 = ssub.s32 4096, 4096
      %18 = vsyncadd [#allocation3], %s17
      %s19 = sshll.u32 [#allocation2], 4
      %s20 = int_to_ptr.vmem [resolvable:$true] %s19
      %25 = dma.hbm_to_vmem [thread:$0]  %s2, 4096, %s20, [#allocation3], 128, 128, 8
    $region13: #{_neuronal_forward.1} parent=1 // pred_fallthru
      _
    // Predicated region
    $region14: #{_neuronal_forward.1} parent=1 // pred_check
      _
    $region15: #{_neuronal_forward.1} parent=1 // pred_check_branch
      %27 = sbr.rel (0) target = $region17
    $region16: #{_neuronal_forward.1} parent=1 // pred_region
      %28 = dma.done [#allocation3], 4096
    $region17: #{_neuronal_forward.1} parent=1 // pred_fallthru
      _
    %v29 = vld [vmem:[%s1] sm:$0xff]
    %v30 = vld [vmem:[#allocation2] sm:$0xff]
    %v31 = vld [vmem:[#allocation2 + $0x8] sm:$0xff]
    %v32 = vld [vmem:[#allocation2 + $0x10] sm:$0xff]
    %v33 = vld [vmem:[#allocation2 + $0x18] sm:$0xff]
    %v34 = vld [vmem:[#allocation2 + $0x20] sm:$0xff]
    %v35 = vld [vmem:[#allocation2 + $0x28] sm:$0xff]
    %v36 = vld [vmem:[#allocation2 + $0x30] sm:$0xff]
    %v37 = vld [vmem:[#allocation2 + $0x38] sm:$0xff]
    %v38 = vld [vmem:[#allocation2 + $0x40] sm:$0xff]
    %v39 = vld [vmem:[#allocation2 + $0x48] sm:$0xff]
    %v40 = vld [vmem:[#allocation2 + $0x50] sm:$0xff]
    %v41 = vld [vmem:[#allocation2 + $0x58] sm:$0xff]
    %v42 = vld [vmem:[#allocation2 + $0x60] sm:$0xff]
    %v43 = vld [vmem:[#allocation2 + $0x68] sm:$0xff]
    %v44 = vld [vmem:[#allocation2 + $0x70] sm:$0xff]
    %v45 = vld [vmem:[#allocation2 + $0x78] sm:$0xff]
    %v46 = vld [vmem:[#allocation2 + $0x80] sm:$0xff]
    %v47 = vld [vmem:[#allocation2 + $0x88] sm:$0xff]
    %v48 = vld [vmem:[#allocation2 + $0x90] sm:$0xff]
    %v49 = vld [vmem:[#allocation2 + $0x98] sm:$0xff]
    %v50 = vld [vmem:[#allocation2 + $0xa0] sm:$0xff]
    %v51 = vld [vmem:[#allocation2 + $0xa8] sm:$0xff]
    %v52 = vld [vmem:[#allocation2 + $0xb0] sm:$0xff]
    %v53 = vld [vmem:[#allocation2 + $0xb8] sm:$0xff]
    %v54 = vld [vmem:[#allocation2 + $0xc0] sm:$0xff]
    %v55 = vld [vmem:[#allocation2 + $0xc8] sm:$0xff]
    %v56 = vld [vmem:[#allocation2 + $0xd0] sm:$0xff]
    %v57 = vld [vmem:[#allocation2 + $0xd8] sm:$0xff]
    %v58 = vld [vmem:[#allocation2 + $0xe0] sm:$0xff]
    %v59 = vld [vmem:[#allocation2 + $0xe8] sm:$0xff]
    %v60 = vld [vmem:[#allocation2 + $0xf0] sm:$0xff]
    %v61 = vld [vmem:[#allocation2 + $0xf8] sm:$0xff]
    %v63 = vunpack.c.l.b16 %v29
    %v64 = vunpack.c.h.b16 %v29
    %v65 = vpack.c.b16 %v63, %v63
    %v66 = vpack.c.b16 %v64, %v64
    %v101 = vunpack.c.l.b16 %v30
    %v102 = vunpack.c.h.b16 %v30
    %v103 = vunpack.c.l.b16 %v31
    %v104 = vunpack.c.h.b16 %v31
    %v105 = vunpack.c.l.b16 %v32
    %v106 = vunpack.c.h.b16 %v32
    %v107 = vunpack.c.l.b16 %v33
    %v108 = vunpack.c.h.b16 %v33
    %v109 = vunpack.c.l.b16 %v34
    %v110 = vunpack.c.h.b16 %v34
    %v111 = vunpack.c.l.b16 %v35
    %v112 = vunpack.c.h.b16 %v35
    %v113 = vunpack.c.l.b16 %v36
    %v114 = vunpack.c.h.b16 %v36
    %v115 = vunpack.c.l.b16 %v37
    %v116 = vunpack.c.h.b16 %v37
    %v117 = vunpack.c.l.b16 %v38
    %v118 = vunpack.c.h.b16 %v38
    %v119 = vunpack.c.l.b16 %v39
    %v120 = vunpack.c.h.b16 %v39
    %v121 = vunpack.c.l.b16 %v40
    %v122 = vunpack.c.h.b16 %v40
    %v123 = vunpack.c.l.b16 %v41
    %v124 = vunpack.c.h.b16 %v41
    %v125 = vunpack.c.l.b16 %v42
    %v126 = vunpack.c.h.b16 %v42
    %v127 = vunpack.c.l.b16 %v43
    %v128 = vunpack.c.h.b16 %v43
    %v129 = vunpack.c.l.b16 %v44
    %v130 = vunpack.c.h.b16 %v44
    %v131 = vunpack.c.l.b16 %v45
    %v132 = vunpack.c.h.b16 %v45
    %v133 = vunpack.c.l.b16 %v46
    %v134 = vunpack.c.h.b16 %v46
    %v135 = vunpack.c.l.b16 %v47
    %v136 = vunpack.c.h.b16 %v47
    %v137 = vunpack.c.l.b16 %v48
    %v138 = vunpack.c.h.b16 %v48
    %v139 = vunpack.c.l.b16 %v49
    %v140 = vunpack.c.h.b16 %v49
    %v141 = vunpack.c.l.b16 %v50
    %v142 = vunpack.c.h.b16 %v50
    %v143 = vunpack.c.l.b16 %v51
    %v144 = vunpack.c.h.b16 %v51
    %v145 = vunpack.c.l.b16 %v52
    %v146 = vunpack.c.h.b16 %v52
    %v147 = vunpack.c.l.b16 %v53
    %v148 = vunpack.c.h.b16 %v53
    %v149 = vunpack.c.l.b16 %v54
    %v150 = vunpack.c.h.b16 %v54
    %v151 = vunpack.c.l.b16 %v55
    %v152 = vunpack.c.h.b16 %v55
    %v153 = vunpack.c.l.b16 %v56
    %v154 = vunpack.c.h.b16 %v56
    %v155 = vunpack.c.l.b16 %v57
    %v156 = vunpack.c.h.b16 %v57
    %v157 = vunpack.c.l.b16 %v58
    %v158 = vunpack.c.h.b16 %v58
    %v159 = vunpack.c.l.b16 %v59
    %v160 = vunpack.c.h.b16 %v59
    %v161 = vunpack.c.l.b16 %v60
    %v162 = vunpack.c.h.b16 %v60
    %v163 = vunpack.c.l.b16 %v61
    %v164 = vunpack.c.h.b16 %v61
    %v165 = vpack.c.b16 %v103, %v101
    %v166 = vpack.c.b16 %v104, %v102
    %v167 = vpack.c.b16 %v107, %v105
    %v168 = vpack.c.b16 %v108, %v106
    %v169 = vpack.c.b16 %v111, %v109
    %v170 = vpack.c.b16 %v112, %v110
    %v171 = vpack.c.b16 %v115, %v113
    %v172 = vpack.c.b16 %v116, %v114
    %v173 = vpack.c.b16 %v119, %v117
    %v174 = vpack.c.b16 %v120, %v118
    %v175 = vpack.c.b16 %v123, %v121
    %v176 = vpack.c.b16 %v124, %v122
    %v177 = vpack.c.b16 %v127, %v125
    %v178 = vpack.c.b16 %v128, %v126
    %v179 = vpack.c.b16 %v131, %v129
    %v180 = vpack.c.b16 %v132, %v130
    %v181 = vpack.c.b16 %v135, %v133
    %v182 = vpack.c.b16 %v136, %v134
    %v183 = vpack.c.b16 %v139, %v137
    %v184 = vpack.c.b16 %v140, %v138
    %v185 = vpack.c.b16 %v143, %v141
    %v186 = vpack.c.b16 %v144, %v142
    %v187 = vpack.c.b16 %v147, %v145
    %v188 = vpack.c.b16 %v148, %v146
    %v189 = vpack.c.b16 %v151, %v149
    %v190 = vpack.c.b16 %v152, %v150
    %v191 = vpack.c.b16 %v155, %v153
    %v192 = vpack.c.b16 %v156, %v154
    %v193 = vpack.c.b16 %v159, %v157
    %v194 = vpack.c.b16 %v160, %v158
    %v195 = vpack.c.b16 %v163, %v161
    %v196 = vpack.c.b16 %v164, %v162
    %229 = vmatprep.subr.bf16.mxu0 %v180
    %230 = vmatpush1.bf16.msra.mxu0 %v179
    %231 = vmatprep.subr.bf16.mxu0 %v178
    %232 = vmatpush1.bf16.msra.mxu0 %v177
    %233 = vmatprep.subr.bf16.mxu0 %v176
    %234 = vmatpush1.bf16.msra.mxu0 %v175
    %235 = vmatprep.subr.bf16.mxu0 %v174
    %236 = vmatpush1.bf16.msra.mxu0 %v173
    %237 = vmatprep.subr.bf16.mxu0 %v172
    %238 = vmatpush1.bf16.msra.mxu0 %v171
    %239 = vmatprep.subr.bf16.mxu0 %v170
    %240 = vmatpush1.bf16.msra.mxu0 %v169
    %241 = vmatprep.subr.bf16.mxu0 %v168
    %242 = vmatpush1.bf16.msra.mxu0 %v167
    %243 = vmatprep.subr.bf16.mxu0 %v166
    %244 = vmatpush1.bf16.msra.mxu0 %v165
    %245 = vmatprep.subr.bf16.mxu0 %v196
    %246 = vmatpush2.bf16.msra.mxu0 %v195
    %247 = vmatprep.subr.bf16.mxu0 %v194
    %248 = vmatpush2.bf16.msra.mxu0 %v193
    %249 = vmatprep.subr.bf16.mxu0 %v192
    %250 = vmatpush2.bf16.msra.mxu0 %v191
    %251 = vmatprep.subr.bf16.mxu0 %v190
    %252 = vmatpush2.bf16.msra.mxu0 %v189
    %253 = vmatprep.subr.bf16.mxu0 %v188
    %254 = vmatpush2.bf16.msra.mxu0 %v187
    %255 = vmatprep.subr.bf16.mxu0 %v186
    %256 = vmatpush2.bf16.msra.mxu0 %v185
    %257 = vmatprep.subr.bf16.mxu0 %v184
    %258 = vmatpush2.bf16.msra.mxu0 %v183
    %259 = vmatprep.subr.bf16.mxu0 %v182
    %260 = vmatpush2.bf16.msra.mxu0 %v181
    %261 = vmatprep.mubr.bf16.mxu0 %v66
    %262 = vmatmul.mubr.bf16.gmra.mxu0 %v65
    %v263 = vpop.f32.mrf.mxu0
    %v264 = vadd.f32 0.0, %v263
    %v265 = vpop.f32.mrf.mxu0
    %v266 = vadd.f32 0.0, %v265
    %v267 = vpop.f32.mrf.mxu0
    %v268 = vpop.f32.mrf.mxu0
    %269 = vdwg.mxu0
    %p270 = scmp.eq.s32.totalorder 0, 0
    // Predicated region
    $region18: #{_neuronal_forward.1} parent=1 // pred_check
      %p271 = pneg %p270
    $region19: #{_neuronal_forward.1} parent=1 // pred_check_branch
      %273 = sbr.rel (%p271) target = $region21
    $region20: #{_neuronal_forward.1} parent=1 // pred_region
      %v274 = vld [vmem:[%s0] sm:$0xff]
      %v275 = vld [vmem:[%s0 + $0x8] sm:$0xff]
      %v276 = vsub.f32 %v264, %v274
      %v277 = vsub.f32 %v266, %v275
      %278 = vst [vmem:[#allocation5] sm:$0xff] %v276
      %279 = vst [vmem:[#allocation5 + $0x8] sm:$0xff] %v277
    $region21: #{_neuronal_forward.1} parent=1 // pred_fallthru
      _
    %p280 = scmp.gt.s32.totalorder 0, 0
    // Predicated region
    $region22: #{_neuronal_forward.1} parent=1 // pred_check
      %p281 = pneg %p280
    $region23: #{_neuronal_forward.1} parent=1 // pred_check_branch
      %283 = sbr.rel (%p281) target = $region25
    $region24: #{_neuronal_forward.1} parent=1 // pred_region
      %v284 = vld [vmem:[#allocation5] sm:$0xff]
      %v285 = vld [vmem:[#allocation5 + $0x8] sm:$0xff]
      %v286 = vadd.f32 %v284, %v264
      %v287 = vadd.f32 %v285, %v266
      %288 = vst [vmem:[#allocation5] sm:$0xff] %v286
      %289 = vst [vmem:[#allocation5 + $0x8] sm:$0xff] %v287
    $region25: #{_neuronal_forward.1} parent=1 // pred_fallthru
      _
    // Predicated region
    $region26: #{_neuronal_forward.1} parent=1 // pred_check
      _
    $region27: #{_neuronal_forward.1} parent=1 // pred_check_branch
      %291 = sbr.rel (0) target = $region29
    $region28: #{_neuronal_forward.1} parent=1 // pred_region
      %s293 = ssub.s32 256, 256
      %294 = vsyncadd [#allocation4], %s293
      %s296 = sshll.u32 [#allocation5], 4
      %s297 = int_to_ptr.vmem [resolvable:$true] %s296
      %299 = dma.vmem_to_hbm [thread:$0]  %s297, 256, %s3, [#allocation4]
    $region29: #{_neuronal_forward.1} parent=1 // pred_fallthru
      _
    // Predicated region
    $region30: #{_neuronal_forward.1} parent=1 // pred_check
      _
    $region31: #{_neuronal_forward.1} parent=1 // pred_check_branch
      %301 = sbr.rel (0) target = $region33
    $region32: #{_neuronal_forward.1} parent=1 // pred_region
      %302 = dma.done [#allocation4], 256
    $region33: #{_neuronal_forward.1} parent=1 // pred_fallthru
      _
    %303 = vsyncpa [#allocation3], 1
    %304 = vsyncpa [#allocation4], 1

</llo_original>
